<compile_context>
chip_gen: v5e
topology: v5e:2x2
jax: 0.10.0
libtpu: 0.0.40
codegen_flags: <defaults>
</compile_context>

<pallas_src>
import math

import jax
import jax.numpy as jnp
from jax.experimental import pallas as pl
from jax.experimental.pallas import tpu as pltpu


def _sinusoidal_kernel(x_ref, tab_ref, o_ref):
    """x_ref: (TB, g) f32, tab_ref: (g+1, W) f32, o_ref: (TB, W) f32.

    tab_ref rows 0..g-1 hold lane-masked frequency rows (freqs_full at lanes
    [k*dim, (k+1)*dim), zero elsewhere); row g holds the phase row (0 in "sin"
    lanes, pi/2 in "cos" lanes).  Output lane j of folded row r:
        sin(x[r, j // dim] * freqs_full[j % dim] + phase[j % dim])
    i.e. [sin | cos] of the classic embedding, g logical rows per lane-dense row.
    """
    g = x_ref.shape[1]
    # g broadcast-multiplies on the VPU; every output lane receives exactly one
    # non-zero contribution (masked lanes add exact zeros), so the arithmetic
    # matches the reference multiply exactly.
    arg = x_ref[:, 0:1] * tab_ref[0:1, :] + tab_ref[g:g + 1, :]
    for k in range(1, g):
        arg = arg + x_ref[:, k:k + 1] * tab_ref[k:k + 1, :]
    # cos(z) == sin(z + pi/2): one transcendental pass + ONE unmasked
    # full-width store instead of two masked half-width stores.
    o_ref[...] = jnp.sin(arg)


def _target_block_bytes() -> int:
    """~8 MiB output tiles on v6e/v7x; ~4 MiB elsewhere (v5e scoped VMEM = 16 MiB)."""
    try:
        kind = jax.devices()[0].device_kind.lower()
    except Exception:  # pragma: no cover - defensive
        kind = ""
    if "v6" in kind or "v7" in kind:
        return 8 * 1024 * 1024
    return 4 * 1024 * 1024


def sinusoidal_pos_emb(x: jax.Array, dim: int) -> jax.Array:
    """x: (B,) positions/timesteps -> (B, dim) [sin | cos] embedding (f32)."""
    assert dim % 2 == 0 and dim >= 4, "dim must be an even integer >= 4"
    b = x.shape[0]
    half_dim = dim // 2

    # ---- frequency / phase tables (built once; tiny, constant-foldable) ----
    scale = math.log(10000.0) / (half_dim - 1)
    freqs_half = jnp.exp(-scale * jnp.arange(half_dim, dtype=jnp.float32))
    freqs_full = jnp.concatenate([freqs_half, freqs_half])            # (dim,)
    phase_full = jnp.concatenate(
        [jnp.zeros((half_dim,), jnp.float32),
         jnp.full((half_dim,), jnp.pi / 2, dtype=jnp.float32)])       # (dim,)

    # ---- lane-dense row folding for small dim ----
    g = 1
    if dim < 128 and 128 % dim == 0 and b % (128 // dim) == 0:
        g = 128 // dim
    w = g * dim

    # Row k of freq_rows = freqs_full at lanes [k*dim, (k+1)*dim), 0 elsewhere.
    freq_rows = jnp.kron(jnp.eye(g, dtype=jnp.float32), freqs_full[None, :])  # (g, W)
    phase_row = jnp.tile(phase_full, g)[None, :]                              # (1, W)
    table = jnp.concatenate([freq_rows, phase_row], axis=0)                   # (g+1, W)

    n_rows = b // g
    x2d = x.astype(jnp.float32).reshape(n_rows, g)

    # ---- batch tiling (double-buffered by the BlockSpec pipeline) ----
    row_bytes = w * 4
    rows_cap = max(8, (_target_block_bytes() // row_bytes) // 8 * 8)
    if n_rows <= rows_cap:
        tb = n_rows                       # one block == full array (legal block)
    else:
        # >= 2 grid steps so both v7x TensorCores get work; tb multiple of 8.
        half_rows = -(-n_rows // 2)
        half_rows = -(-half_rows // 8) * 8
        tb = min(rows_cap, half_rows)
    grid = (pl.cdiv(n_rows, tb),)

    out = pl.pallas_call(
        _sinusoidal_kernel,
        out_shape=jax.ShapeDtypeStruct((n_rows, w), jnp.float32),
        grid=grid,
        in_specs=[
            pl.BlockSpec((tb, g), lambda i: (i, 0)),        # batch tile
            pl.BlockSpec((g + 1, w), lambda i: (0, 0)),     # resident tables
        ],
        out_specs=pl.BlockSpec((tb, w), lambda i: (i, 0)),
        compiler_params=pltpu.CompilerParams(
            dimension_semantics=("parallel",),
        ),
        cost_estimate=pl.CostEstimate(
            flops=2 * b * dim * g,
            transcendentals=b * dim,
            bytes_accessed=4 * (b + b * dim + (g + 1) * w),
        ),
    )(x2d, table)

    # Free row-major reshape back to the consumer-facing (B, dim) layout.
    return out.reshape(b, dim)


def _reference(x: jax.Array, dim: int) -> jax.Array:
    half_dim = dim // 2
    emb = math.log(10000.0) / (half_dim - 1)
    emb = jnp.exp(jnp.arange(half_dim, dtype=jnp.float32) * -emb)
    emb = x.astype(jnp.float32)[:, None] * emb[None, :]
    return jnp.concatenate([jnp.sin(emb), jnp.cos(emb)], axis=-1)


if __name__ == "__main__":
    key = jax.random.PRNGKey(0)
    # (B, dim): folded lane-dense path, non-foldable fallback, and dim >= 128 path.
    configs = [(8, 32), (6, 32), (16, 256)]
    for b, dim in configs:
        key, sub = jax.random.split(key)
        # timestep-like positive floats
        x = jax.random.uniform(sub, (b,), dtype=jnp.float32, minval=0.0, maxval=100.0)
        out = jax.block_until_ready(sinusoidal_pos_emb(x, dim))
        ref = _reference(x, dim)
        assert out.shape == (b, dim), out.shape
        # cos is computed as sin(z + pi/2); the f32 rounding of (z + pi/2) can
        # differ from cos(z) by a couple of ulps at |z| ~ 100, hence 2e-5.
        assert jnp.allclose(out, ref, atol=2e-5, rtol=2e-5), (b, dim)
    print("KERNEL_OK")
</pallas_src>

<mosaic_0001>
module attributes {stable_mosaic.version = 11 : i64} {
  func.func @_sinusoidal_kernel(%arg0: i32, %arg1: memref<2x4xf32, #tpu.memory_space<vmem>>, %arg2: memref<5x128xf32, #tpu.memory_space<vmem>>, %arg3: memref<2x128xf32, #tpu.memory_space<vmem>>) attributes {dimension_semantics = [#tpu.dimension_semantics<parallel>], iteration_bounds = array<i64: 1>, scalar_prefetch = 0 : i64, scratch_operands = 0 : i64, tpu.core_type = #tpu.core_type<tc>, window_params = [{transform_indices = @transform_0, window_bounds = array<i64: 2, 4>}, {pipeline_mode = #tpu.pipeline_mode<synchronous>, transform_indices = @transform_1, window_bounds = array<i64: 5, 128>}, {transform_indices = @transform_2, window_bounds = array<i64: 2, 128>}]} {
    %c0 = arith.constant 0 : index
    %c0_0 = arith.constant 0 : index
    %0 = vector.load %arg1[%c0, %c0_0] : memref<2x4xf32, #tpu.memory_space<vmem>>, vector<2x1xf32>
    %c0_1 = arith.constant 0 : index
    %c0_2 = arith.constant 0 : index
    %1 = vector.load %arg2[%c0_1, %c0_2] : memref<5x128xf32, #tpu.memory_space<vmem>>, vector<1x128xf32>
    %2 = vector.broadcast %0 : vector<2x1xf32> to vector<2x128xf32>
    %3 = vector.broadcast %1 : vector<1x128xf32> to vector<2x128xf32>
    %4 = arith.mulf %2, %3 : vector<2x128xf32>
    %c4 = arith.constant 4 : index
    %c0_3 = arith.constant 0 : index
    %5 = vector.load %arg2[%c4, %c0_3] : memref<5x128xf32, #tpu.memory_space<vmem>>, vector<1x128xf32>
    %6 = vector.broadcast %5 : vector<1x128xf32> to vector<2x128xf32>
    %7 = arith.addf %4, %6 : vector<2x128xf32>
    %c0_4 = arith.constant 0 : index
    %c1 = arith.constant 1 : index
    %8 = vector.load %arg1[%c0_4, %c1] : memref<2x4xf32, #tpu.memory_space<vmem>>, vector<2x1xf32>
    %c1_5 = arith.constant 1 : index
    %c0_6 = arith.constant 0 : index
    %9 = vector.load %arg2[%c1_5, %c0_6] : memref<5x128xf32, #tpu.memory_space<vmem>>, vector<1x128xf32>
    %10 = vector.broadcast %8 : vector<2x1xf32> to vector<2x128xf32>
    %11 = vector.broadcast %9 : vector<1x128xf32> to vector<2x128xf32>
    %12 = arith.mulf %10, %11 : vector<2x128xf32>
    %13 = arith.addf %7, %12 : vector<2x128xf32>
    %c0_7 = arith.constant 0 : index
    %c2 = arith.constant 2 : index
    %14 = vector.load %arg1[%c0_7, %c2] : memref<2x4xf32, #tpu.memory_space<vmem>>, vector<2x1xf32>
    %c2_8 = arith.constant 2 : index
    %c0_9 = arith.constant 0 : index
    %15 = vector.load %arg2[%c2_8, %c0_9] : memref<5x128xf32, #tpu.memory_space<vmem>>, vector<1x128xf32>
    %16 = vector.broadcast %14 : vector<2x1xf32> to vector<2x128xf32>
    %17 = vector.broadcast %15 : vector<1x128xf32> to vector<2x128xf32>
    %18 = arith.mulf %16, %17 : vector<2x128xf32>
    %19 = arith.addf %13, %18 : vector<2x128xf32>
    %c0_10 = arith.constant 0 : index
    %c3 = arith.constant 3 : index
    %20 = vector.load %arg1[%c0_10, %c3] : memref<2x4xf32, #tpu.memory_space<vmem>>, vector<2x1xf32>
    %c3_11 = arith.constant 3 : index
    %c0_12 = arith.constant 0 : index
    %21 = vector.load %arg2[%c3_11, %c0_12] : memref<5x128xf32, #tpu.memory_space<vmem>>, vector<1x128xf32>
    %22 = vector.broadcast %20 : vector<2x1xf32> to vector<2x128xf32>
    %23 = vector.broadcast %21 : vector<1x128xf32> to vector<2x128xf32>
    %24 = arith.mulf %22, %23 : vector<2x128xf32>
    %25 = arith.addf %19, %24 : vector<2x128xf32>
    %26 = math.sin %25 : vector<2x128xf32>
    %c0_13 = arith.constant 0 : index
    %c0_14 = arith.constant 0 : index
    %27 = vector.load %arg3[%c0_13, %c0_14] : memref<2x128xf32, #tpu.memory_space<vmem>>, vector<2x128xf32>
    tpu.vector_store %arg3[%c0_13, %c0_14], %26 {strides = array<i32>} : memref<2x128xf32, #tpu.memory_space<vmem>>, vector<2x128xf32>,
    return
  }
  func.func @transform_0(%arg0: i32) -> (i32, i32) {
    %c0_i32 = arith.constant 0 : i32
    %c0_i32_0 = arith.constant 0 : i32
    return %arg0, %c0_i32 : i32, i32
  }
  func.func @transform_1(%arg0: i32) -> (i32, i32) {
    %c0_i32 = arith.constant 0 : i32
    %c0_i32_0 = arith.constant 0 : i32
    %c0_i32_1 = arith.constant 0 : i32
    return %c0_i32, %c0_i32_0 : i32, i32
  }
  func.func @transform_2(%arg0: i32) -> (i32, i32) {
    %c0_i32 = arith.constant 0 : i32
    %c0_i32_0 = arith.constant 0 : i32
    return %arg0, %c0_i32 : i32, i32
  }
}

</mosaic_0001>

<llo_original>
// kernel: tpu_custom_call.1
$region0: #{tpu_custom_call.1}
  #allocation0 [shape = 'u32[]', space=smem, size = 0x4, offset = 0x4, fixed_abs, tag = 'smem constant byte address 0x4 - core index']
  #allocation1 [shape = 'u32[72,128]{1,0:T(1,128)}', space=vmem, size = 0x9000, scoped, tag = 'internal scratch']
  %s0 = inlined_call_operand.hbm [shape: f32[2,4], index: 0, kind: input, shape index: {}]
  %s1 = inlined_call_operand.hbm [shape: f32[5,128], index: 1, kind: input, shape index: {}]
  %s2 = inlined_call_operand.hbm [shape: f32[2,128], index: 2, kind: output, shape index: {}]
  %s3 = sld [smem:[#allocation0]]
  $region26: #{tpu_custom_call.1} parent=0
    _
  %s5 = ssub.s32 1, %s3
  %s6 = scalar_select 0, %s5, %s3
  $region1: #{tpu_custom_call.1} parent=0
    #allocation2 [shape = 'u8[1024]{0}', space=vmem, size = 0x400, scoped, tag = 'input window, operand 0, single buffered']
    #allocation3 [shape = 's32[1]{0}', space=sflag, size = 0x4, scoped, tag = 'scoped memory for tpu_custom_call.1']
    #allocation4 [shape = 's32[1]{0}', space=sflag, size = 0x4, scoped, tag = 'scoped memory for tpu_custom_call.1']
    #allocation5 [shape = 'u8[4096]{0}', space=vmem, size = 0x1000, scoped, tag = 'input window, operand 1, single buffered']
    #allocation6 [shape = 's32[1]{0}', space=sflag, size = 0x4, scoped, tag = 'scoped memory for tpu_custom_call.1']
    #allocation7 [shape = 'u8[1024]{0}', space=vmem, size = 0x400, scoped, tag = 'output window, operand 0, single buffered']
    %7 = vsyncpa [#allocation3], 0
    %8 = vsyncpa [#allocation6], 0
    %9 = vsyncpa [#allocation4], 0
    // Predicated region
    $region2: #{tpu_custom_call.1} parent=1 // pred_check
      _
    $region3: #{tpu_custom_call.1} parent=1 // pred_check_branch
      %11 = sbr.rel (0) target = $region5
    $region4: #{tpu_custom_call.1} parent=1 // pred_region
      %13 = vsyncadd [#allocation3], 0
      %s15 = sshll.u32 %s0, 4
      %s16 = int_to_ptr.hbm [resolvable:$true] %s15
      %s17 = sshll.u32 [#allocation2], 4
      %s18 = int_to_ptr.vmem [resolvable:$true] %s17
      %20 = dma.hbm_to_vmem [thread:$0]  %s16, 32, %s18, [#allocation3]
    $region5: #{tpu_custom_call.1} parent=1 // pred_fallthru
      _
    // Predicated region
    $region6: #{tpu_custom_call.1} parent=1 // pred_check
      _
    $region7: #{tpu_custom_call.1} parent=1 // pred_check_branch
      %22 = sbr.rel (0) target = $region9
    $region8: #{tpu_custom_call.1} parent=1 // pred_region
      %24 = vsyncadd [#allocation6], 0
      %s26 = sshll.u32 %s1, 4
      %s27 = int_to_ptr.hbm [resolvable:$true] %s26
      %s28 = sshll.u32 [#allocation5], 4
      %s29 = int_to_ptr.vmem [resolvable:$true] %s28
      %31 = dma.hbm_to_vmem [thread:$0]  %s27, 128, %s29, [#allocation6]
    $region9: #{tpu_custom_call.1} parent=1 // pred_fallthru
      _
    // Predicated region
    $region10: #{tpu_custom_call.1} parent=1 // pred_check
      _
    $region11: #{tpu_custom_call.1} parent=1 // pred_check_branch
      %33 = sbr.rel (0) target = $region13
    $region12: #{tpu_custom_call.1} parent=1 // pred_region
      %35 = dma.done [#allocation3], 32
    $region13: #{tpu_custom_call.1} parent=1 // pred_fallthru
      _
    // Predicated region
    $region14: #{tpu_custom_call.1} parent=1 // pred_check
      _
    $region15: #{tpu_custom_call.1} parent=1 // pred_check_branch
      %37 = sbr.rel (0) target = $region17
    $region16: #{tpu_custom_call.1} parent=1 // pred_region
      %39 = dma.done [#allocation6], 128
    $region17: #{tpu_custom_call.1} parent=1 // pred_fallthru
      _
    %v40 = vld [vmem:[#allocation2] sm:$0x3]
    %v41 = vld [vmem:[#allocation5] sm:$0x1]
    %43 = vset.pattern.permute.xlu0 0
    %44 = vperm.xlu0 %43, %v40
    %v45 = vpop.permute.xlu0 %44
    %v47 = vperm.slane %v41, 0
    %v48 = vmul.f32 %v45, %v47
    %v49 = vld [vmem:[#allocation5 + $0x4] sm:$0x1]
    %v50 = vperm.slane %v49, 0
    %v51 = vadd.f32 %v48, %v50
    %v52 = vld [vmem:[#allocation5 + $0x1] sm:$0x1]
    %53 = vset.pattern.permute.xlu0 1
    %54 = vperm.xlu0 %53, %v40
    %v55 = vpop.permute.xlu0 %54
    %v57 = vperm.slane %v52, 0
    %v58 = vmul.f32 %v55, %v57
    %v59 = vadd.f32 %v51, %v58
    %v60 = vld [vmem:[#allocation5 + $0x2] sm:$0x1]
    %61 = vset.pattern.permute.xlu0 2
    %62 = vperm.xlu0 %61, %v40
    %v63 = vpop.permute.xlu0 %62
    %v65 = vperm.slane %v60, 0
    %v66 = vmul.f32 %v63, %v65
    %v67 = vadd.f32 %v59, %v66
    %v68 = vld [vmem:[#allocation5 + $0x3] sm:$0x1]
    %69 = vset.pattern.permute.xlu0 3
    %70 = vperm.xlu0 %69, %v40
    %v71 = vpop.permute.xlu0 %70
    %v73 = vperm.slane %v68, 0
    %v74 = vmul.f32 %v71, %v73
    %v75 = vadd.f32 %v67, %v74
    %v76 = vand.u32 2147483647, %v75
    %vm77 = vcmp.le.f32.partialorder %v76, 0.7853982
    %vm78 = vcmp.lt.s32.totalorder %v75, 0
    %v79 = vand.u32 %v75, 2139095040
    %v80 = vshrl.u32 %v79, 23
    %v81 = vsub.s32 %v80, 127
    %v82 = vand.u32 2147483647, %v75
    %v83 = vand.u32 %v82, 8388607
    %v84 = vor.u32 %v83, 8388608
    %v85 = vsub.s32 0, %v84
    %v86 = vadd.s32 %v81, 1
    %vm87 = vcmp.gt.s32.totalorder %v86, 0
    %v88 = vsel %vm87, %v86, 0
    %v89 = vshrl.u32 %v88, 5
    %v90 = vand.u32 %v88, 31
    %v91 = vsub.s32 32, %v90
    %v92 = vshrl.u32 683565275, %v91
    %v93 = vshll.u32 683565275, %v90
    %v94 = vshrl.u32 2475754826, %v91
    %v95 = vor.u32 %v93, %v94
    %v96 = vshll.u32 2475754826, %v90
    %v97 = vshrl.u32 2131351028, %v91
    %v98 = vor.u32 %v96, %v97
    %v99 = vshll.u32 2131351028, %v90
    %v100 = vshrl.u32 2102212464, %v91
    %v101 = vor.u32 %v99, %v100
    %v102 = vshll.u32 2102212464, %v90
    %v103 = vshrl.u32 920167782, %v91
    %v104 = vor.u32 %v102, %v103
    %v105 = vshll.u32 920167782, %v90
    %v106 = vshrl.u32 1326507024, %v91
    %v107 = vor.u32 %v105, %v106
    %vm108 = vcmp.lt.s32.totalorder %v89, 1
    %vm109 = vcmp.lt.s32.totalorder %v89, 2
    %vm110 = vcmp.lt.s32.totalorder %v89, 3
    %vm111 = vcmp.lt.s32.totalorder %v89, 4
    %v112 = vsel %vm108, %v92, %v95
    %v113 = vsel %vm111, %v101, 2102212464
    %v114 = vsel %vm110, %v98, %v113
    %v115 = vsel %vm109, %v112, %v114
    %v116 = vsel %vm108, %v95, %v98
    %v117 = vsel %vm111, %v104, 920167782
    %v118 = vsel %vm110, %v101, %v117
    %v119 = vsel %vm109, %v116, %v118
    %v120 = vsel %vm108, %v98, %v101
    %v121 = vsel %vm111, %v107, 1326507024
    %v122 = vsel %vm110, %v104, %v121
    %v123 = vsel %vm109, %v120, %v122
    %v124 = vshll.u32 %v84, 8
    %v125 = vand.u32 %v124, 65535
    %v126 = vshrl.u32 %v124, 16
    %v127 = vand.u32 %v123, 65535
    %v128 = vshrl.u32 %v123, 16
    %v129 = vmul.u32 %v125, %v127
    %v130 = vmul.u32 %v125, %v128
    %v131 = vmul.u32 %v126, %v127
    %v132 = vmul.u32 %v126, %v128
    %v133 = vshll.u32 %v130, 16
    %v134 = vshrl.u32 %v130, 16
    %v135 = vshll.u32 %v131, 16
    %v136 = vshrl.u32 %v131, 16
    %vm137 = vc.u32 %v129, %v133
    %v138 = vsel %vm137, 1, 0
    %v139 = vadd.s32 %v129, %v133
    %v140 = vadd.s32 %v132, %v138
    %vm141 = vc.u32 %v139, %v135
    %v142 = vsel %vm141, 1, 0
    %v143 = vadd.s32 %v139, %v135
    %v144 = vadd.s32 %v140, %v142
    %v145 = vadd.s32 %v144, %v134
    %v146 = vadd.s32 %v145, %v136
    %v147 = vand.u32 %v124, 65535
    %v148 = vshrl.u32 %v124, 16
    %v149 = vand.u32 %v119, 65535
    %v150 = vshrl.u32 %v119, 16
    %v151 = vmul.u32 %v147, %v149
    %v152 = vmul.u32 %v147, %v150
    %v153 = vmul.u32 %v148, %v149
    %v154 = vmul.u32 %v148, %v150
    %v155 = vshll.u32 %v152, 16
    %v156 = vshrl.u32 %v152, 16
    %v157 = vshll.u32 %v153, 16
    %v158 = vshrl.u32 %v153, 16
    %vm159 = vc.u32 %v151, %v155
    %v160 = vsel %vm159, 1, 0
    %v161 = vadd.s32 %v151, %v155
    %v162 = vadd.s32 %v154, %v160
    %vm163 = vc.u32 %v161, %v157
    %v164 = vsel %vm163, 1, 0
    %v165 = vadd.s32 %v161, %v157
    %v166 = vadd.s32 %v162, %v164
    %v167 = vadd.s32 %v166, %v156
    %v168 = vadd.s32 %v167, %v158
    %v169 = vmul.u32 %v124, %v115
    %v170 = vadd.s32 %v146, %v165
    %vm171 = vc.u32 %v146, %v165
    %v172 = vadd.s32 %v168, 1
    %v173 = vsel %vm171, %v172, %v168
    %v174 = vadd.s32 %v169, %v173
    %v175 = vadd.s32 %v174, 536870912
    %v176 = vshrl.u32 %v175, 30
    %v177 = vshll.u32 %v176, 30
    %v178 = vsub.s32 %v174, %v177
    %vm179 = vcmp.lt.s32.totalorder %v178, 0
    %v180 = vsub.s32 0, %v178
    %v181 = vsel %vm179, %v180, %v178
    %v182 = vclz %v181
    %v183 = vsub.s32 %v182, 2
    %vm184 = vcmp.gt.s32.totalorder 0, %v183
    %v185 = vsel %vm184, 0, %v183
    %v186 = vsub.s32 32, %v185
    %v187 = vshll.u32 %v178, %v185
    %v188 = vshrl.u32 %v170, %v186
    %v189 = vor.u32 %v187, %v188
    %v190 = vsub.s32 4294967266, %v185
    %v191 = vadd.s32 %v190, 127
    %v192 = vshll.u32 %v191, 23
    %v193 = vor.u32 4788187, %v192
    %v194 = vand.u32 2147483647, %v193
    %v196 = vcvt.s32.f32 %v189
    %v197 = vmul.f32 %v196, %v194
    %v198 = vxor.u32 %v197, 2147483648
    %v199 = vsel %vm78, %v198, %v197
    %v200 = vsub.s32 4, %v176
    %v201 = vsel %vm78, %v200, %v176
    %v202 = vsel %vm77, %v75, %v199
    %v203 = vsel %vm77, 0, %v201
    %v204 = vmul.f32 %v202, %v202
    %v205 = vmul.f32 %v204, -0.001358992
    %v206 = vadd.f32 %v205, 0.041655596
    %v207 = vmul.f32 %v204, %v206
    %v208 = vadd.f32 %v207, -0.4999988
    %v209 = vmul.f32 %v204, %v208
    %v210 = vadd.f32 1.0, %v209
    %v211 = vmul.f32 %v202, %v202
    %v212 = vmul.f32 %v211, -0.00019511016
    %v213 = vadd.f32 %v212, 0.008332121
    %v214 = vmul.f32 %v211, %v213
    %v215 = vadd.f32 %v214, -0.16666654
    %v216 = vmul.f32 %v211, %v215
    %v217 = vadd.f32 %v216, 1.0
    %v218 = vmul.f32 %v217, %v202
    %vm219 = vweird.f32 %v75
    %v220 = vadd.s32 %v203, 3
    %v221 = vand.u32 %v220, 3
    %vm222 = vcmp.lt.s32.totalorder %v221, 2
    %vm223 = vcmp.eq.s32.totalorder %v221, 0
    %v224 = vxor.u32 %v218, 2147483648
    %v225 = vsel %vm223, %v210, %v224
    %vm226 = vcmp.eq.s32.totalorder %v221, 2
    %v227 = vxor.u32 %v210, 2147483648
    %v228 = vsel %vm226, %v227, %v218
    %v229 = vsel %vm222, %v225, %v228
    %v230 = vsel %vm219, nan, %v229
    %231 = vst [vmem:[#allocation7] sm:$0x3] %v230
    // Predicated region
    $region18: #{tpu_custom_call.1} parent=1 // pred_check
      _
    $region19: #{tpu_custom_call.1} parent=1 // pred_check_branch
      %233 = sbr.rel (0) target = $region21
    $region20: #{tpu_custom_call.1} parent=1 // pred_region
      %235 = vsyncadd [#allocation4], 0
      %s237 = sshll.u32 [#allocation7], 4
      %s238 = int_to_ptr.vmem [resolvable:$true] %s237
      %s239 = sshll.u32 %s2, 4
      %s240 = int_to_ptr.hbm [resolvable:$true] %s239
      %242 = dma.vmem_to_hbm [thread:$0]  %s238, 32, %s240, [#allocation4]
    $region21: #{tpu_custom_call.1} parent=1 // pred_fallthru
      _
    // Predicated region
    $region22: #{tpu_custom_call.1} parent=1 // pred_check
      _
    $region23: #{tpu_custom_call.1} parent=1 // pred_check_branch
      %244 = sbr.rel (0) target = $region25
    $region24: #{tpu_custom_call.1} parent=1 // pred_region
      %246 = dma.done [#allocation4], 32
    $region25: #{tpu_custom_call.1} parent=1 // pred_fallthru
      _
    %247 = vsyncpa [#allocation3], 1
    %248 = vsyncpa [#allocation6], 1
    %249 = vsyncpa [#allocation4], 1

</llo_original>
